<compile_context>
chip_gen: v7x
topology: tpu7x:2x2x1
jax: 0.10.0
libtpu: 0.0.40
codegen_flags: <defaults>
</compile_context>

<pallas_src>
import functools

import jax
import jax.numpy as jnp
from jax.experimental import pallas as pl
from jax.experimental.pallas import tpu as pltpu


def _round_up(x: int, m: int) -> int:
    return (x + m - 1) // m * m


def _cdiv(a: int, b: int) -> int:
    return (a + b - 1) // b


def _sublane(dtype) -> int:
    itemsize = jnp.dtype(dtype).itemsize
    if itemsize >= 4:
        return 8
    if itemsize == 2:
        return 16
    return 32


def _default_blocks():
    """Generation-specific tile defaults (tm, tn, tk)."""
    try:
        kind = jax.devices()[0].device_kind.lower()
    except Exception:  # pragma: no cover - defensive
        kind = ""
    if ("v5 lite" in kind) or ("v5e" in kind) or ("v5lite" in kind):
        # v5e: ~16 MiB default scoped VMEM -> stay small.
        return 512, 512, 512
    # v6e / v7x: tm ~= 2*tn pushes intensity past the HBM/MXU crossover while
    # keeping the double-buffered footprint under the 32 MiB scoped default.
    return 1024, 512, 1024


def _swiglu_kernel(beta_ref, x_ref, w1_ref, w2_ref, b1_ref, b2_ref,
                   o_ref, acc1_ref, acc2_ref):
    """Grid step (i, j, k):

    x_ref   : [tm, tk]   row/K tile of the token matrix (input dtype)
    w1_ref  : [tk, tn]   W1 column tile (input dtype)
    w2_ref  : [tk, tn]   W2 column tile (input dtype)
    b1_ref  : [1, tn]    b1 tile (f32)
    b2_ref  : [1, tn]    b2 tile (f32)
    o_ref   : [tm, tn]   output tile
    acc1/2  : [tm, tn]   f32 VMEM accumulators, persistent across the K axis
    """
    k = pl.program_id(2)

    @pl.when(k == 0)
    def _init():
        acc1_ref[...] = jnp.zeros_like(acc1_ref)
        acc2_ref[...] = jnp.zeros_like(acc2_ref)

    # Load the x tile once; two fused-K MXU passes share the resident LHS.
    x = x_ref[...]
    acc1_ref[...] += jnp.dot(x, w1_ref[...], preferred_element_type=jnp.float32)
    acc2_ref[...] += jnp.dot(x, w2_ref[...], preferred_element_type=jnp.float32)

    @pl.when(k == pl.num_programs(2) - 1)
    def _finalize():
        x1 = acc1_ref[...] + b1_ref[...]           # f32 bias add
        x2 = acc2_ref[...] + b2_ref[...]
        beta = beta_ref[0]                         # scalar Swish beta (SMEM)
        gate = x2 * jax.nn.sigmoid(beta * x2)      # Swish(x2) in f32 (VPU/EUP)
        o_ref[...] = (x1 * gate).astype(o_ref.dtype)


@functools.partial(jax.jit, static_argnames=("block_m", "block_n", "block_k"))
def _swiglu_impl(x, w1, b1, w2, b2, beta, *, block_m, block_n, block_k):
    d_model = x.shape[-1]
    dim_ff = w1.shape[-1]
    lead_shape = x.shape[:-1]

    sublane = _sublane(x.dtype)
    assert block_m % sublane == 0 and block_n % 128 == 0 and block_k % 128 == 0

    x2d = x.reshape(-1, d_model)
    m = x2d.shape[0]

    # Clamp tile sizes for small problems (dtype-correct sublane rounding).
    tm = min(block_m, _round_up(m, sublane))
    tn = min(block_n, _round_up(dim_ff, 128))
    tk = min(block_k, _round_up(d_model, 128))

    # Make sure the parallel (i, j) grid has >= 2 tiles when possible so both
    # v7x TensorCores get work.  Prefer splitting N (keeps tm, and thus
    # weight-stream reuse, large).
    for _ in range(8):
        if _cdiv(m, tm) * _cdiv(dim_ff, tn) >= 2:
            break
        new_tn = _round_up(max(128, tn // 2), 128)
        new_tm = _round_up(max(sublane, tm // 2), sublane)
        if new_tn < tn and _cdiv(dim_ff, new_tn) > _cdiv(dim_ff, tn):
            tn = new_tn
        elif new_tm < tm and _cdiv(m, new_tm) > _cdiv(m, tm):
            tm = new_tm
        else:
            break

    m_pad = _round_up(m, tm)
    n_pad = _round_up(dim_ff, tn)
    k_pad = _round_up(d_model, tk)

    # Zero-pad only when needed (aligned shapes take the no-copy path).
    if (m_pad, k_pad) != (m, d_model):
        x2d = jnp.pad(x2d, ((0, m_pad - m), (0, k_pad - d_model)))
    if (k_pad, n_pad) != (d_model, dim_ff):
        w1 = jnp.pad(w1, ((0, k_pad - d_model), (0, n_pad - dim_ff)))
        w2 = jnp.pad(w2, ((0, k_pad - d_model), (0, n_pad - dim_ff)))
    if w1.dtype != x.dtype:
        w1 = w1.astype(x.dtype)
    if w2.dtype != x.dtype:
        w2 = w2.astype(x.dtype)

    if n_pad != dim_ff:
        b1 = jnp.pad(b1, (0, n_pad - dim_ff))
        b2 = jnp.pad(b2, (0, n_pad - dim_ff))
    b1 = b1.astype(jnp.float32).reshape(1, n_pad)
    b2 = b2.astype(jnp.float32).reshape(1, n_pad)

    beta_1d = jnp.asarray(beta, dtype=jnp.float32).reshape(1)

    out2d = pl.pallas_call(
        _swiglu_kernel,
        out_shape=jax.ShapeDtypeStruct((m_pad, n_pad), x.dtype),
        grid_spec=pltpu.PrefetchScalarGridSpec(
            num_scalar_prefetch=0,
            grid=(m_pad // tm, n_pad // tn, k_pad // tk),
            in_specs=[
                # scalar beta lives in SMEM, untiled
                pl.BlockSpec(memory_space=pltpu.MemorySpace.SMEM),
                # row/K tile of the token matrix
                pl.BlockSpec((tm, tk), lambda i, j, k: (i, k)),
                # W1 / W2 column tiles (no wrapper-side interleave)
                pl.BlockSpec((tk, tn), lambda i, j, k: (k, j)),
                pl.BlockSpec((tk, tn), lambda i, j, k: (k, j)),
                # bias tiles (f32)
                pl.BlockSpec((1, tn), lambda i, j, k: (0, j)),
                pl.BlockSpec((1, tn), lambda i, j, k: (0, j)),
            ],
            out_specs=pl.BlockSpec((tm, tn), lambda i, j, k: (i, j)),
            scratch_shapes=[
                pltpu.VMEM((tm, tn), jnp.float32),
                pltpu.VMEM((tm, tn), jnp.float32),
            ],
        ),
        compiler_params=pltpu.CompilerParams(
            dimension_semantics=("parallel", "parallel", "arbitrary")),
    )(beta_1d, x2d, w1, w2, b1, b2)

    out2d = out2d[:m, :dim_ff]
    return out2d.reshape(*lead_shape, dim_ff)


def swiglu(x, w1, b1, w2, b2, beta, *, block_m=None, block_n=None, block_k=None):
    """SwiGLU forward.

    Args:
      x:    [..., d_model]
      w1:   [d_model, dim_feedforward]   (linear1 weight, transposed vs torch)
      b1:   [dim_feedforward]
      w2:   [d_model, dim_feedforward]   (linear2 weight, transposed vs torch)
      b2:   [dim_feedforward]
      beta: [1]  scalar Swish parameter
    Returns:
      [..., dim_feedforward] with x.dtype
    """
    if block_m is None or block_n is None or block_k is None:
        dm, dn, dk = _default_blocks()
        block_m = dm if block_m is None else block_m
        block_n = dn if block_n is None else block_n
        block_k = dk if block_k is None else block_k
    return _swiglu_impl(x, w1, b1, w2, b2, beta,
                        block_m=block_m, block_n=block_n, block_k=block_k)


def _reference(x, w1, b1, w2, b2, beta):
    x1 = x @ w1 + b1
    x2 = x @ w2 + b2
    return x1 * (x2 * jax.nn.sigmoid(beta * x2))


if __name__ == "__main__":
    key = jax.random.PRNGKey(0)

    def _make(key, shape_x, d_model, dim_ff):
        kx, kw1, kb1, kw2, kb2 = jax.random.split(key, 5)
        x = jax.random.normal(kx, shape_x, dtype=jnp.float32)
        w1 = jax.random.normal(kw1, (d_model, dim_ff), dtype=jnp.float32) * 0.05
        b1 = jax.random.normal(kb1, (dim_ff,), dtype=jnp.float32) * 0.05
        w2 = jax.random.normal(kw2, (d_model, dim_ff), dtype=jnp.float32) * 0.05
        b2 = jax.random.normal(kb2, (dim_ff,), dtype=jnp.float32) * 0.05
        beta = jnp.ones((1,), dtype=jnp.float32)  # Swish beta init = ones(1)
        return x, w1, b1, w2, b2, beta

    k1, k2 = jax.random.split(key)

    # Test 1: aligned small shapes (batch=2, seq=8, d_model=128, dim_ff=256).
    x, w1, b1, w2, b2, beta = _make(k1, (2, 8, 128), 128, 256)
    out = jax.block_until_ready(swiglu(x, w1, b1, w2, b2, beta))
    ref = _reference(x, w1, b1, w2, b2, beta[0])
    assert out.shape == (2, 8, 256)
    assert jnp.allclose(out, ref, atol=1e-5, rtol=1e-5), "mismatch (aligned case)"

    # Test 2: unaligned shapes exercising the padding path
    # (batch=2, seq=5, d_model=32, dim_ff=64).
    x, w1, b1, w2, b2, beta = _make(k2, (2, 5, 32), 32, 64)
    out = jax.block_until_ready(swiglu(x, w1, b1, w2, b2, beta))
    ref = _reference(x, w1, b1, w2, b2, beta[0])
    assert out.shape == (2, 5, 64)
    assert jnp.allclose(out, ref, atol=1e-5, rtol=1e-5), "mismatch (padded case)"

    print("KERNEL_OK")
</pallas_src>

<mosaic_0001>
module attributes {stable_mosaic.version = 11 : i64} {
  func.func @_swiglu_kernel(%arg0: i32, %arg1: i32, %arg2: i32, %arg3: memref<1xf32, #tpu.memory_space<smem>>, %arg4: memref<16x128xf32, #tpu.memory_space<vmem>>, %arg5: memref<128x128xf32, #tpu.memory_space<vmem>>, %arg6: memref<128x128xf32, #tpu.memory_space<vmem>>, %arg7: memref<1x128xf32, #tpu.memory_space<vmem>>, %arg8: memref<1x128xf32, #tpu.memory_space<vmem>>, %arg9: memref<16x128xf32, #tpu.memory_space<vmem>>, %arg10: memref<16x128xf32, #tpu.memory_space<vmem>>, %arg11: memref<16x128xf32, #tpu.memory_space<vmem>>) attributes {dimension_semantics = [#tpu.dimension_semantics<parallel>, #tpu.dimension_semantics<parallel>, #tpu.dimension_semantics<arbitrary>], iteration_bounds = array<i64: 1, 2, 1>, scalar_prefetch = 0 : i64, scratch_operands = 2 : i64, tpu.core_type = #tpu.core_type<tc>, window_params = [{transform_indices = @transform_0, window_bounds = array<i64: 1>}, {transform_indices = @transform_1, window_bounds = array<i64: 16, 128>}, {transform_indices = @transform_2, window_bounds = array<i64: 128, 128>}, {transform_indices = @transform_3, window_bounds = array<i64: 128, 128>}, {transform_indices = @transform_4, window_bounds = array<i64: 1, 128>}, {transform_indices = @transform_5, window_bounds = array<i64: 1, 128>}, {transform_indices = @transform_6, window_bounds = array<i64: 16, 128>}]} {
    %c0_i32 = arith.constant 0 : i32
    %0 = arith.cmpi eq, %arg2, %c0_i32 : i32
    %1 = arith.extui %0 : i1 to i32
    %c0_i32_0 = arith.constant 0 : i32
    %2 = arith.cmpi ne, %1, %c0_i32_0 : i32
    scf.if %2 {
      %cst_17 = arith.constant 0.000000e+00 : f32
      %17 = vector.broadcast %cst_17 : f32 to vector<16x128xf32>
      %c0_18 = arith.constant 0 : index
      %c0_19 = arith.constant 0 : index
      %18 = vector.load %arg10[%c0_18, %c0_19] : memref<16x128xf32, #tpu.memory_space<vmem>>, vector<16x128xf32>
      tpu.vector_store %arg10[%c0_18, %c0_19], %17 {strides = array<i32>} : memref<16x128xf32, #tpu.memory_space<vmem>>, vector<16x128xf32>,
      %cst_20 = arith.constant 0.000000e+00 : f32
      %19 = vector.broadcast %cst_20 : f32 to vector<16x128xf32>
      %c0_21 = arith.constant 0 : index
      %c0_22 = arith.constant 0 : index
      %20 = vector.load %arg11[%c0_21, %c0_22] : memref<16x128xf32, #tpu.memory_space<vmem>>, vector<16x128xf32>
      tpu.vector_store %arg11[%c0_21, %c0_22], %19 {strides = array<i32>} : memref<16x128xf32, #tpu.memory_space<vmem>>, vector<16x128xf32>,
    } else {
    }
    %c0 = arith.constant 0 : index
    %c0_1 = arith.constant 0 : index
    %3 = vector.load %arg4[%c0, %c0_1] : memref<16x128xf32, #tpu.memory_space<vmem>>, vector<16x128xf32>
    %c0_2 = arith.constant 0 : index
    %c0_3 = arith.constant 0 : index
    %4 = vector.load %arg10[%c0_2, %c0_3] : memref<16x128xf32, #tpu.memory_space<vmem>>, vector<16x128xf32>
    %c0_4 = arith.constant 0 : index
    %c0_5 = arith.constant 0 : index
    %5 = vector.load %arg5[%c0_4, %c0_5] : memref<128x128xf32, #tpu.memory_space<vmem>>, vector<128x128xf32>
    %cst = arith.constant dense<0.000000e+00> : vector<16x128xf32>
    %6 = tpu.matmul %3, %5, %cst {dimension_numbers = #tpu.dot_dimension_numbers<[1], [0], [0], [1], [0, 0, 1, 1], [], []>} : vector<16x128xf32>, vector<128x128xf32>, vector<16x128xf32> -> vector<16x128xf32>
    %7 = arith.addf %4, %6 : vector<16x128xf32>
    %c0_6 = arith.constant 0 : index
    %c0_7 = arith.constant 0 : index
    %8 = vector.load %arg10[%c0_6, %c0_7] : memref<16x128xf32, #tpu.memory_space<vmem>>, vector<16x128xf32>
    tpu.vector_store %arg10[%c0_6, %c0_7], %7 {strides = array<i32>} : memref<16x128xf32, #tpu.memory_space<vmem>>, vector<16x128xf32>,
    %c0_8 = arith.constant 0 : index
    %c0_9 = arith.constant 0 : index
    %9 = vector.load %arg11[%c0_8, %c0_9] : memref<16x128xf32, #tpu.memory_space<vmem>>, vector<16x128xf32>
    %c0_10 = arith.constant 0 : index
    %c0_11 = arith.constant 0 : index
    %10 = vector.load %arg6[%c0_10, %c0_11] : memref<128x128xf32, #tpu.memory_space<vmem>>, vector<128x128xf32>
    %cst_12 = arith.constant dense<0.000000e+00> : vector<16x128xf32>
    %11 = tpu.matmul %3, %10, %cst_12 {dimension_numbers = #tpu.dot_dimension_numbers<[1], [0], [0], [1], [0, 0, 1, 1], [], []>} : vector<16x128xf32>, vector<128x128xf32>, vector<16x128xf32> -> vector<16x128xf32>
    %12 = arith.addf %9, %11 : vector<16x128xf32>
    %c0_13 = arith.constant 0 : index
    %c0_14 = arith.constant 0 : index
    %13 = vector.load %arg11[%c0_13, %c0_14] : memref<16x128xf32, #tpu.memory_space<vmem>>, vector<16x128xf32>
    tpu.vector_store %arg11[%c0_13, %c0_14], %12 {strides = array<i32>} : memref<16x128xf32, #tpu.memory_space<vmem>>, vector<16x128xf32>,
    %c0_i32_15 = arith.constant 0 : i32
    %14 = arith.cmpi eq, %arg2, %c0_i32_15 : i32
    %15 = arith.extui %14 : i1 to i32
    %c0_i32_16 = arith.constant 0 : i32
    %16 = arith.cmpi ne, %15, %c0_i32_16 : i32
    scf.if %16 {
      %c0_17 = arith.constant 0 : index
      %c0_18 = arith.constant 0 : index
      %17 = vector.load %arg10[%c0_17, %c0_18] : memref<16x128xf32, #tpu.memory_space<vmem>>, vector<16x128xf32>
      %c0_19 = arith.constant 0 : index
      %c0_20 = arith.constant 0 : index
      %18 = vector.load %arg7[%c0_19, %c0_20] : memref<1x128xf32, #tpu.memory_space<vmem>>, vector<1x128xf32>
      %19 = vector.broadcast %18 : vector<1x128xf32> to vector<16x128xf32>
      %20 = arith.addf %17, %19 : vector<16x128xf32>
      %c0_21 = arith.constant 0 : index
      %c0_22 = arith.constant 0 : index
      %21 = vector.load %arg11[%c0_21, %c0_22] : memref<16x128xf32, #tpu.memory_space<vmem>>, vector<16x128xf32>
      %c0_23 = arith.constant 0 : index
      %c0_24 = arith.constant 0 : index
      %22 = vector.load %arg8[%c0_23, %c0_24] : memref<1x128xf32, #tpu.memory_space<vmem>>, vector<1x128xf32>
      %23 = vector.broadcast %22 : vector<1x128xf32> to vector<16x128xf32>
      %24 = arith.addf %21, %23 : vector<16x128xf32>
      %c0_25 = arith.constant 0 : index
      %25 = memref.load %arg3[%c0_25] : memref<1xf32, #tpu.memory_space<smem>>
      %26 = vector.broadcast %25 : f32 to vector<16x128xf32>
      %27 = arith.mulf %26, %24 : vector<16x128xf32>
      %28 = arith.negf %27 : vector<16x128xf32>
      %29 = math.exp %28 : vector<16x128xf32>
      %cst_26 = arith.constant 1.000000e+00 : f32
      %30 = vector.broadcast %cst_26 : f32 to vector<16x128xf32>
      %31 = arith.addf %30, %29 : vector<16x128xf32>
      %32 = arith.divf %30, %31 : vector<16x128xf32>
      %33 = arith.mulf %24, %32 : vector<16x128xf32>
      %34 = arith.mulf %20, %33 : vector<16x128xf32>
      %c0_27 = arith.constant 0 : index
      %c0_28 = arith.constant 0 : index
      %35 = vector.load %arg9[%c0_27, %c0_28] : memref<16x128xf32, #tpu.memory_space<vmem>>, vector<16x128xf32>
      tpu.vector_store %arg9[%c0_27, %c0_28], %34 {strides = array<i32>} : memref<16x128xf32, #tpu.memory_space<vmem>>, vector<16x128xf32>,
    } else {
    }
    return
  }
  func.func @transform_0(%arg0: i32, %arg1: i32, %arg2: i32) -> i32 {
    %c0_i32 = arith.constant 0 : i32
    %c0_i32_0 = arith.constant 0 : i32
    return %c0_i32 : i32
  }
  func.func @transform_1(%arg0: i32, %arg1: i32, %arg2: i32) -> (i32, i32) {
    %c0_i32 = arith.constant 0 : i32
    return %arg0, %arg2 : i32, i32
  }
  func.func @transform_2(%arg0: i32, %arg1: i32, %arg2: i32) -> (i32, i32) {
    %c0_i32 = arith.constant 0 : i32
    return %arg2, %arg1 : i32, i32
  }
  func.func @transform_3(%arg0: i32, %arg1: i32, %arg2: i32) -> (i32, i32) {
    %c0_i32 = arith.constant 0 : i32
    return %arg2, %arg1 : i32, i32
  }
  func.func @transform_4(%arg0: i32, %arg1: i32, %arg2: i32) -> (i32, i32) {
    %c0_i32 = arith.constant 0 : i32
    %c0_i32_0 = arith.constant 0 : i32
    return %c0_i32, %arg1 : i32, i32
  }
  func.func @transform_5(%arg0: i32, %arg1: i32, %arg2: i32) -> (i32, i32) {
    %c0_i32 = arith.constant 0 : i32
    %c0_i32_0 = arith.constant 0 : i32
    return %c0_i32, %arg1 : i32, i32
  }
  func.func @transform_6(%arg0: i32, %arg1: i32, %arg2: i32) -> (i32, i32) {
    %c0_i32 = arith.constant 0 : i32
    return %arg0, %arg1 : i32, i32
  }
}

</mosaic_0001>

<llo_original>
// kernel: _swiglu_impl.1
$region0: #{_swiglu_impl.1}
  #allocation0 [shape = 'u32[]', space=smem, size = 0x4, offset = 0x4, fixed_abs, tag = 'smem constant byte address 0x4 - core index']
  #allocation1 [shape = 'u32[144,128]{1,0:T(1,128)}', space=vmem, size = 0x12000, scoped, tag = 'internal scratch']
  #allocation2 [shape = 'f32[16,128]{1,0:T(8,128)}', space=vmem, size = 0x2000, scoped, tag = 'scratch operand']
  #allocation3 [shape = 'f32[16,128]{1,0:T(8,128)}', space=vmem, size = 0x2000, scoped, tag = 'scratch operand']
  #allocation4 [shape = 'f32[1]{0:T(128)S(6)}', space=smem, size = 0x200, scoped, tag = 'scoped memory for _swiglu_impl.1']
  %s0 = inlined_call_operand.<no memory space> [shape: f32[1], index: 0, kind: input, shape index: {}]
  %s1 = inlined_call_operand.hbm [shape: f32[16,128], index: 1, kind: input, shape index: {}]
  %s2 = inlined_call_operand.hbm [shape: f32[128,256], index: 2, kind: input, shape index: {}]
  %s3 = inlined_call_operand.hbm [shape: f32[128,256], index: 3, kind: input, shape index: {}]
  %s4 = inlined_call_operand.vmem [shape: f32[1,256], index: 4, kind: input, shape index: {}]
  %s5 = inlined_call_operand.vmem [shape: f32[1,256], index: 5, kind: input, shape index: {}]
  %s6 = inlined_call_operand.hbm [shape: f32[16,256], index: 6, kind: output, shape index: {}]
  %s7 = sld [smem:[#allocation0]]
  $region77: #{_swiglu_impl.1} parent=0
    _
  %s9 = ssub.s32 1, %s7
  %s10 = scalar_select 0, %s9, %s7
  %11 = sst [smem:[#allocation4]] %s0
  $region1: #{_swiglu_impl.1} parent=0
    #allocation5 [shape = 'u8[8192]{0}', space=vmem, size = 0x2000, scoped, tag = 'input window, operand 1, single buffered']
    #allocation6 [shape = 's32[2]{0}', space=sflag, size = 0x8, scoped, tag = 'scoped memory for _swiglu_impl.1']
    #allocation7 [shape = 's32[2]{0}', space=sflag, size = 0x8, scoped, tag = 'scoped memory for _swiglu_impl.1']
    #allocation8 [shape = 'u8[131072]{0}', space=vmem, size = 0x20000, scoped, tag = 'input window, operand 2']
    #allocation9 [shape = 's32[2]{0}', space=sflag, size = 0x8, scoped, tag = 'scoped memory for _swiglu_impl.1']
    #allocation10 [shape = 'u8[131072]{0}', space=vmem, size = 0x20000, scoped, tag = 'input window, operand 3']
    #allocation11 [shape = 'u8[16384]{0}', space=vmem, size = 0x4000, scoped, tag = 'output window, operand 0']
    %12 = vsyncpa [#allocation6], 0
    %13 = vsyncpa [#allocation9], 0
    %s14 = scalar_lea.sflag [#allocation9], 1
    %15 = vsyncpa %s14, 0
    %16 = vsyncpa [#allocation7], 0
    %s17 = scalar_lea.sflag [#allocation7], 1
    %18 = vsyncpa %s17, 0
    loop: start=0, step=1, limit=4
    $region2: #{_swiglu_impl.1} parent=1 // loop_pre_header
      _
    $region3: #{_swiglu_impl.1} parent=1 // loop_header
      %s20 = sphi 0, %s24
      %p21 = scmp.ge.s32.totalorder %s20, 4
      %s27 = sphi 0, %s46
      %s28 = sphi 0, %s42
      %s29 = sphi 0, %s38
      %s30 = sphi 0, %s27
      %s31 = sphi 0, %s28
      %s32 = sphi 0, %s29
      %s33 = sphi 0, %s30
      %s34 = sphi 0, %s31
      %s35 = sphi 0, %s32
      %s47 = sphi 0, %s47
      %s49 = sphi 0, %s47
      %s50 = sphi 0, %s49
      %s64 = sphi 0, %s50
      %s72 = sphi 0, %s74
      %s75 = sphi 0, %s72
      %s76 = sphi 0, %s75
      %s92 = sphi 0, %s76
      %s100 = sphi 0, %s102
      %s103 = sphi 0, %s100
      %s104 = sphi 0, %s103
      %s120 = sphi 0, %s104
      %s128 = sphi 0, %s130
      %s131 = sphi 0, %s128
      %s132 = sphi 0, %s131
      %s148 = sphi 0, %s132
      %s154 = sphi 0, %s156
      %s157 = sphi 0, %s154
      %s158 = sphi 0, %s157
      %s174 = sphi 0, %s158
      %s180 = sphi 0, %s182
      %s183 = sphi 0, %s180
      %s184 = sphi 0, %s183
      %s200 = sphi 0, %s184
      %s208 = sphi 0, %s210
      %s211 = sphi 0, %s208
      %s212 = sphi 0, %s211
      %s228 = sphi 0, %s212
    $region4: #{_swiglu_impl.1} parent=1 // loop_header_branch
      %23 = sbr.rel (%p21) target = $region8
    $region5: #{_swiglu_impl.1} parent=1 // loop_body
      %s25 = ssub.s32 %s20, 1
      %s26 = ssub.s32 %s20, 2
      %s36 = sadd.s32 1, %s29
      %p37 = scmp.ge.s32.totalorder %s36, 1
      %s38 = scalar_select %p37, 0, %s36
      %s39 = sadd.s32 1, %s28
      %s40 = scalar_select %p37, %s39, %s28
      %p41 = scmp.ge.s32.totalorder %s40, 2
      %s42 = scalar_select %p41, 0, %s40
      %s43 = sadd.s32 1, %s27
      %s44 = scalar_select %p41, %s43, %s27
      %p45 = scmp.ge.s32.totalorder %s44, 1
      %s46 = scalar_select %p45, 0, %s44
      %s48 = sadd.s32 %s47, 1
      %p51 = scmp.eq.s32.totalorder %s20, 1
      %p52 = scmp.ne.s32.totalorder %s47, %s49
      %p53 = scmp.eq.s32.totalorder %s20, 0
      %p54 = por %p52, %p53
      %p55 = scmp.ne.s32.totalorder %s47, %s49
      %p56 = scmp.eq.s32.totalorder %s25, 1
      %p57 = por %p55, %p56
      %p58 = scmp.ne.s32.totalorder %s49, %s50
      %p59 = scmp.eq.s32.totalorder %s25, 0
      %p60 = por %p58, %p59
      %p61 = scmp.ne.s32.totalorder %s49, %s50
      %p62 = scmp.eq.s32.totalorder %s26, 1
      %p63 = por %p61, %p62
      %p65 = scmp.ne.s32.totalorder %s50, %s64
      %p66 = scmp.eq.s32.totalorder %s26, 0
      %p67 = por %p65, %p66
      %s68 = ssub.s32 %s27, %s46
      %s69 = ssub.s32 %s29, %s38
      %s70 = sor.u32 %s68, %s69
      %p71 = scmp.eq.s32.totalorder %s70, 0
      %s73 = sadd.s32 %s72, 1
      %s74 = scalar_select %p71, %s72, %s73
      %p77 = pneg %p71
      %p78 = scmp.eq.s32.totalorder %s20, 1
      %p79 = por %p77, %p78
      %p80 = scmp.ne.s32.totalorder %s72, %s75
      %p81 = scmp.eq.s32.totalorder %s20, 0
      %p82 = por %p80, %p81
      %p83 = scmp.ne.s32.totalorder %s72, %s75
      %p84 = scmp.eq.s32.totalorder %s25, 1
      %p85 = por %p83, %p84
      %p86 = scmp.ne.s32.totalorder %s75, %s76
      %p87 = scmp.eq.s32.totalorder %s25, 0
      %p88 = por %p86, %p87
      %p89 = scmp.ne.s32.totalorder %s75, %s76
      %p90 = scmp.eq.s32.totalorder %s26, 1
      %p91 = por %p89, %p90
      %p93 = scmp.ne.s32.totalorder %s76, %s92
      %p94 = scmp.eq.s32.totalorder %s26, 0
      %p95 = por %p93, %p94
      %s96 = ssub.s32 %s29, %s38
      %s97 = ssub.s32 %s28, %s42
      %s98 = sor.u32 %s96, %s97
      %p99 = scmp.eq.s32.totalorder %s98, 0
      %s101 = sadd.s32 %s100, 1
      %s102 = scalar_select %p99, %s100, %s101
      %p105 = pneg %p99
      %p106 = scmp.eq.s32.totalorder %s20, 1
      %p107 = por %p105, %p106
      %p108 = scmp.ne.s32.totalorder %s100, %s103
      %p109 = scmp.eq.s32.totalorder %s20, 0
      %p110 = por %p108, %p109
      %p111 = scmp.ne.s32.totalorder %s100, %s103
      %p112 = scmp.eq.s32.totalorder %s25, 1
      %p113 = por %p111, %p112
      %p114 = scmp.ne.s32.totalorder %s103, %s104
      %p115 = scmp.eq.s32.totalorder %s25, 0
      %p116 = por %p114, %p115
      %p117 = scmp.ne.s32.totalorder %s103, %s104
      %p118 = scmp.eq.s32.totalorder %s26, 1
      %p119 = por %p117, %p118
      %p121 = scmp.ne.s32.totalorder %s104, %s120
      %p122 = scmp.eq.s32.totalorder %s26, 0
      %p123 = por %p121, %p122
      %s124 = ssub.s32 %s29, %s38
      %s125 = ssub.s32 %s28, %s42
      %s126 = sor.u32 %s124, %s125
      %p127 = scmp.eq.s32.totalorder %s126, 0
      %s129 = sadd.s32 %s128, 1
      %s130 = scalar_select %p127, %s128, %s129
      %p133 = pneg %p127
      %p134 = scmp.eq.s32.totalorder %s20, 1
      %p135 = por %p133, %p134
      %p136 = scmp.ne.s32.totalorder %s128, %s131
      %p137 = scmp.eq.s32.totalorder %s20, 0
      %p138 = por %p136, %p137
      %p139 = scmp.ne.s32.totalorder %s128, %s131
      %p140 = scmp.eq.s32.totalorder %s25, 1
      %p141 = por %p139, %p140
      %p142 = scmp.ne.s32.totalorder %s131, %s132
      %p143 = scmp.eq.s32.totalorder %s25, 0
      %p144 = por %p142, %p143
      %p145 = scmp.ne.s32.totalorder %s131, %s132
      %p146 = scmp.eq.s32.totalorder %s26, 1
      %p147 = por %p145, %p146
      %p149 = scmp.ne.s32.totalorder %s132, %s148
      %p150 = scmp.eq.s32.totalorder %s26, 0
      %p151 = por %p149, %p150
      %s152 = ssub.s32 %s28, %s42
      %p153 = scmp.eq.s32.totalorder %s152, 0
      %s155 = sadd.s32 %s154, 1
      %s156 = scalar_select %p153, %s154, %s155
      %p159 = pneg %p153
      %p160 = scmp.eq.s32.totalorder %s20, 1
      %p161 = por %p159, %p160
      %p162 = scmp.ne.s32.totalorder %s154, %s157
      %p163 = scmp.eq.s32.totalorder %s20, 0
      %p164 = por %p162, %p163
      %p165 = scmp.ne.s32.totalorder %s154, %s157
      %p166 = scmp.eq.s32.totalorder %s25, 1
      %p167 = por %p165, %p166
      %p168 = scmp.ne.s32.totalorder %s157, %s158
      %p169 = scmp.eq.s32.totalorder %s25, 0
      %p170 = por %p168, %p169
      %p171 = scmp.ne.s32.totalorder %s157, %s158
      %p172 = scmp.eq.s32.totalorder %s26, 1
      %p173 = por %p171, %p172
      %p175 = scmp.ne.s32.totalorder %s158, %s174
      %p176 = scmp.eq.s32.totalorder %s26, 0
      %p177 = por %p175, %p176
      %s178 = ssub.s32 %s28, %s42
      %p179 = scmp.eq.s32.totalorder %s178, 0
      %s181 = sadd.s32 %s180, 1
      %s182 = scalar_select %p179, %s180, %s181
      %p185 = pneg %p179
      %p186 = scmp.eq.s32.totalorder %s20, 1
      %p187 = por %p185, %p186
      %p188 = scmp.ne.s32.totalorder %s180, %s183
      %p189 = scmp.eq.s32.totalorder %s20, 0
      %p190 = por %p188, %p189
      %p191 = scmp.ne.s32.totalorder %s180, %s183
      %p192 = scmp.eq.s32.totalorder %s25, 1
      %p193 = por %p191, %p192
      %p194 = scmp.ne.s32.totalorder %s183, %s184
      %p195 = scmp.eq.s32.totalorder %s25, 0
      %p196 = por %p194, %p195
      %p197 = scmp.ne.s32.totalorder %s183, %s184
      %p198 = scmp.eq.s32.totalorder %s26, 1
      %p199 = por %p197, %p198
      %p201 = scmp.ne.s32.totalorder %s184, %s200
      %p202 = scmp.eq.s32.totalorder %s26, 0
      %p203 = por %p201, %p202
      %s204 = ssub.s32 %s27, %s46
      %s205 = ssub.s32 %s28, %s42
      %s206 = sor.u32 %s204, %s205
      %p207 = scmp.eq.s32.totalorder %s206, 0
      %s209 = sadd.s32 %s208, 1
      %s210 = scalar_select %p207, %s208, %s209
      %p213 = pneg %p207
      %p214 = scmp.eq.s32.totalorder %s20, 1
      %p215 = por %p213, %p214
      %p216 = scmp.ne.s32.totalorder %s208, %s211
      %p217 = scmp.eq.s32.totalorder %s20, 0
      %p218 = por %p216, %p217
      %p219 = scmp.ne.s32.totalorder %s208, %s211
      %p220 = scmp.eq.s32.totalorder %s25, 1
      %p221 = por %p219, %p220
      %p222 = scmp.ne.s32.totalorder %s211, %s212
      %p223 = scmp.eq.s32.totalorder %s25, 0
      %p224 = por %p222, %p223
      %p225 = scmp.ne.s32.totalorder %s211, %s212
      %p226 = scmp.eq.s32.totalorder %s26, 1
      %p227 = por %p225, %p226
      %p229 = scmp.ne.s32.totalorder %s212, %s228
      %p230 = scmp.eq.s32.totalorder %s26, 0
      %p231 = por %p229, %p230
      %p232 = scmp.le.s32.totalorder 1, %s20
      %p233 = scmp.lt.s32.totalorder %s20, 3
      %p234 = pnand %p232, %p233
      %p235 = pneg %p234
      // Predicated region
      $region9: #{_swiglu_impl.1} parent=5 // pred_check
        _
      $region10: #{_swiglu_impl.1} parent=5 // pred_check_branch
        %237 = sbr.rel (%p234) target = $region12
      $region11: #{_swiglu_impl.1} parent=5 // pred_region
        %s238 = ssub.s32 %s20, 1
        // Predicated region
        $region13: #{_swiglu_impl.1} parent=11 // pred_check
          %p239 = pneg %p60
        $region14: #{_swiglu_impl.1} parent=11 // pred_check_branch
          %241 = sbr.rel (%p239) target = $region16
        $region15: #{_swiglu_impl.1} parent=11 // pred_region
          _
        $region16: #{_swiglu_impl.1} parent=11 // pred_fallthru
          _
        // Predicated region
        $region17: #{_swiglu_impl.1} parent=11 // pred_check
          %p242 = pneg %p88
        $region18: #{_swiglu_impl.1} parent=11 // pred_check_branch
          %244 = sbr.rel (%p242) target = $region20
        $region19: #{_swiglu_impl.1} parent=11 // pred_region
          %s245 = smul.u32 2, %s30
          %s247 = ssub.s32 256, 256
          %248 = vsyncadd [#allocation6], %s247
          %s249 = sadd.s32 %s32, %s245
          %s250 = smul.addr %s249, 128
          %s251 = scalar_lea.hbm %s1, %s250
          %s252 = sshll.u32 [#allocation5], 4
          %s253 = int_to_ptr.vmem [resolvable:$true] %s252
          %258 = dma.hbm_to_vmem [thread:$0]  %s251, 256, %s253, [#allocation6], 128, 128, 8
        $region20: #{_swiglu_impl.1} parent=11 // pred_fallthru
          _
      $region12: #{_swiglu_impl.1} parent=5 // pred_fallthru
        _
      %p259 = scmp.lt.s32.totalorder %s20, 2
      // Predicated region
      $region21: #{_swiglu_impl.1} parent=5 // pred_check
        %p260 = pneg %p259
      $region22: #{_swiglu_impl.1} parent=5 // pred_check_branch
        %262 = sbr.rel (%p260) target = $region24
      $region23: #{_swiglu_impl.1} parent=5 // pred_region
        // Predicated region
        $region25: #{_swiglu_impl.1} parent=23 // pred_check
          %p263 = pneg %p110
        $region26: #{_swiglu_impl.1} parent=23 // pred_check_branch
          %265 = sbr.rel (%p263) target = $region28
        $region27: #{_swiglu_impl.1} parent=23 // pred_region
          %s266 = sand.u32 %s20, 1
          %s267 = scalar_lea.sflag [#allocation9], %s266
          %s268 = sand.u32 %s100, 1
          %s269 = smul.addr %s268, 128
          %s270 = scalar_lea.vmem [#allocation8], %s269
          %s271 = smul.u32 16, %s29
          %s273 = ssub.s32 2048, 2048
          %274 = vsyncadd %s267, %s273
          %s275 = smul.addr %s271, 2
          %s276 = sadd.s32 %s28, %s275
          %s277 = smul.addr %s276, 128
          %s278 = scalar_lea.hbm %s2, %s277
          %s279 = sshll.u32 %s270, 4
          %s280 = int_to_ptr.vmem [resolvable:$true] %s279
          %285 = dma.hbm_to_vmem [thread:$0]  %s278, 2048, %s280, %s267, 256, 128, 8
        $region28: #{_swiglu_impl.1} parent=23 // pred_fallthru
          _
        // Predicated region
        $region29: #{_swiglu_impl.1} parent=23 // pred_check
          %p286 = pneg %p138
        $region30: #{_swiglu_impl.1} parent=23 // pred_check_branch
          %288 = sbr.rel (%p286) target = $region32
        $region31: #{_swiglu_impl.1} parent=23 // pred_region
          %s289 = sand.u32 %s20, 1
          %s290 = scalar_lea.sflag [#allocation9], %s289
          %s291 = sand.u32 %s128, 1
          %s292 = smul.addr %s291, 128
          %s293 = scalar_lea.vmem [#allocation10], %s292
          %s294 = smul.u32 16, %s29
          %s296 = ssub.s32 2048, 2048
          %297 = vsyncadd %s290, %s296
          %s298 = smul.addr %s294, 2
          %s299 = sadd.s32 %s28, %s298
          %s300 = smul.addr %s299, 128
          %s301 = scalar_lea.hbm %s3, %s300
          %s302 = sshll.u32 %s293, 4
          %s303 = int_to_ptr.vmem [resolvable:$true] %s302
          %308 = dma.hbm_to_vmem [thread:$0]  %s301, 2048, %s303, %s290, 256, 128, 8
        $region32: #{_swiglu_impl.1} parent=23 // pred_fallthru
          _
        // Predicated region
        $region33: #{_swiglu_impl.1} parent=23 // pred_check
          %p309 = pneg %p164
        $region34: #{_swiglu_impl.1} parent=23 // pred_check_branch
          %311 = sbr.rel (%p309) target = $region36
        $region35: #{_swiglu_impl.1} parent=23 // pred_region
          %p312 = scmp.lt.s32.totalorder %s28, 1
          %s313 = scalar_select %p312, %s28, 1
          %s314 = scalar_lea.vmem %s4, %s313
        $region36: #{_swiglu_impl.1} parent=23 // pred_fallthru
          _
        // Predicated region
        $region37: #{_swiglu_impl.1} parent=23 // pred_check
          %p315 = pneg %p190
        $region38: #{_swiglu_impl.1} parent=23 // pred_check_branch
          %317 = sbr.rel (%p315) target = $region40
        $region39: #{_swiglu_impl.1} parent=23 // pred_region
          %p318 = scmp.lt.s32.totalorder %s28, 1
          %s319 = scalar_select %p318, %s28, 1
          %s320 = scalar_lea.vmem %s5, %s319
        $region40: #{_swiglu_impl.1} parent=23 // pred_fallthru
          _
      $region24: #{_swiglu_impl.1} parent=5 // pred_fallthru
        _
      %p321 = scmp.le.s32.totalorder 1, %s20
      %p322 = scmp.lt.s32.totalorder %s20, 3
      %p323 = pnand %p321, %p322
      %p324 = pneg %p323
      // Predicated region
      $region41: #{_swiglu_impl.1} parent=5 // pred_check
        _
      $region42: #{_swiglu_impl.1} parent=5 // pred_check_branch
        %326 = sbr.rel (%p323) target = $region44
      $region43: #{_swiglu_impl.1} parent=5 // pred_region
        %s327 = ssub.s32 %s20, 1
        // Predicated region
        $region45: #{_swiglu_impl.1} parent=43 // pred_check
          %p328 = pneg %p88
        $region46: #{_swiglu_impl.1} parent=43 // pred_check_branch
          %330 = sbr.rel (%p328) target = $region48
        $region47: #{_swiglu_impl.1} parent=43 // pred_region
          %331 = dma.done [#allocation6], 256
        $region48: #{_swiglu_impl.1} parent=43 // pred_fallthru
          _
        %s332 = sand.u32 %s25, 1
        %s333 = scalar_lea.sflag [#allocation9], %s332
        %s334 = sand.u32 %s103, 1
        %s335 = smul.addr %s334, 128
        %s336 = scalar_lea.vmem [#allocation8], %s335
        // Predicated region
        $region49: #{_swiglu_impl.1} parent=43 // pred_check
          %p337 = pneg %p116
        $region50: #{_swiglu_impl.1} parent=43 // pred_check_branch
          %339 = sbr.rel (%p337) target = $region52
        $region51: #{_swiglu_impl.1} parent=43 // pred_region
          %340 = dma.done %s333, 2048
        $region52: #{_swiglu_impl.1} parent=43 // pred_fallthru
          _
        %s341 = sand.u32 %s25, 1
        %s342 = scalar_lea.sflag [#allocation9], %s341
        %s343 = sand.u32 %s131, 1
        %s344 = smul.addr %s343, 128
        %s345 = scalar_lea.vmem [#allocation10], %s344
        // Predicated region
        $region53: #{_swiglu_impl.1} parent=43 // pred_check
          %p346 = pneg %p144
        $region54: #{_swiglu_impl.1} parent=43 // pred_check_branch
          %348 = sbr.rel (%p346) target = $region56
        $region55: #{_swiglu_impl.1} parent=43 // pred_region
          %349 = dma.done %s342, 2048
        $region56: #{_swiglu_impl.1} parent=43 // pred_fallthru
          _
        %p350 = pneg %p60
        %p351 = pneg %p57
        %p352 = pneg %p88
        %p353 = pneg %p85
        %s354 = sand.u32 %s25, 1
        %s355 = scalar_lea.sflag [#allocation9], %s354
        %s356 = sand.u32 %s103, 1
        %s357 = smul.addr %s356, 128
        %s358 = scalar_lea.vmem [#allocation8], %s357
        %p359 = pneg %p116
        %p360 = pneg %p113
        %s361 = sand.u32 %s25, 1
        %s362 = scalar_lea.sflag [#allocation9], %s361
        %s363 = sand.u32 %s131, 1
        %s364 = smul.addr %s363, 128
        %s365 = scalar_lea.vmem [#allocation10], %s364
        %p366 = pneg %p144
        %p367 = pneg %p141
        %p368 = scmp.lt.s32.totalorder %s31, 1
        %s369 = scalar_select %p368, %s31, 1
        %s370 = scalar_lea.vmem %s4, %s369
        %p371 = pneg %p170
        %p372 = pneg %p167
        %p373 = scmp.lt.s32.totalorder %s31, 1
        %s374 = scalar_select %p373, %s31, 1
        %s375 = scalar_lea.vmem %s5, %s374
        %p376 = pneg %p196
        %p377 = pneg %p193
        %p378 = pneg %p224
        %p379 = pneg %p221
        %s380 = sand.u32 %s211, 1
        %s381 = scalar_lea.sflag [#allocation7], %s380
        %s382 = sand.u32 %s211, 1
        %s383 = smul.addr %s382, 16
        %s384 = scalar_lea.vmem [#allocation11], %s383
        %s385 = smul.u32 2, %s30
        %s386 = smul.u32 16, %s32
        %s387 = smul.u32 16, %s32
        %p388 = scmp.lt.s32.totalorder %s31, 1
        %s389 = scalar_select %p388, %s31, 1
        %s390 = scalar_lea.vmem %s4, %s389
        %p391 = scmp.lt.s32.totalorder %s31, 1
        %s392 = scalar_select %p391, %s31, 1
        %s393 = scalar_lea.vmem %s5, %s392
        %s394 = smul.u32 2, %s30
        %p395 = scmp.eq.s32.totalorder %s32, 0
        // Predicated region
        $region57: #{_swiglu_impl.1} parent=43 // pred_check
          %p396 = pneg %p395
        $region58: #{_swiglu_impl.1} parent=43 // pred_check_branch
          %398 = sbr.rel (%p396) target = $region60
        $region59: #{_swiglu_impl.1} parent=43 // pred_region
          %399 = vst [vmem:[#allocation2] sm:$0xff] 0.0
          %400 = vst [vmem:[#allocation2 + $0x8] sm:$0xff] 0.0
          %401 = vst [vmem:[#allocation3] sm:$0xff] 0.0
          %402 = vst [vmem:[#allocation3 + $0x8] sm:$0xff] 0.0
        $region60: #{_swiglu_impl.1} parent=43 // pred_fallthru
          _
        %v403 = vld [vmem:[#allocation5] sm:$0xff]
        %v404 = vld [vmem:[#allocation5 + $0x8] sm:$0xff]
        %v405 = vld [vmem:[#allocation2] sm:$0xff]
        %v406 = vld [vmem:[#allocation2 + $0x8] sm:$0xff]
        %v407 = vld [vmem:[%s336] sm:$0xff]
        %v408 = vld [vmem:[%s336 + $0x8] sm:$0xff]
        %v409 = vld [vmem:[%s336 + $0x10] sm:$0xff]
        %v410 = vld [vmem:[%s336 + $0x18] sm:$0xff]
        %v411 = vld [vmem:[%s336 + $0x20] sm:$0xff]
        %v412 = vld [vmem:[%s336 + $0x28] sm:$0xff]
        %v413 = vld [vmem:[%s336 + $0x30] sm:$0xff]
        %v414 = vld [vmem:[%s336 + $0x38] sm:$0xff]
        %v415 = vld [vmem:[%s336 + $0x40] sm:$0xff]
        %v416 = vld [vmem:[%s336 + $0x48] sm:$0xff]
        %v417 = vld [vmem:[%s336 + $0x50] sm:$0xff]
        %v418 = vld [vmem:[%s336 + $0x58] sm:$0xff]
        %v419 = vld [vmem:[%s336 + $0x60] sm:$0xff]
        %v420 = vld [vmem:[%s336 + $0x68] sm:$0xff]
        %v421 = vld [vmem:[%s336 + $0x70] sm:$0xff]
        %v422 = vld [vmem:[%s336 + $0x78] sm:$0xff]
        %423 = vmatprep.subr.mxu0 0.0
        %424 = vmatpush1.msra.mxu0 %v407
        %425 = vmatprep.subr.mxu0 0.0
        %426 = vmatpush1.msra.mxu0 %v408
        %427 = vmatprep.subr.mxu0 0.0
        %428 = vmatpush1.msra.mxu0 %v409
        %429 = vmatprep.subr.mxu0 0.0
        %430 = vmatpush1.msra.mxu0 %v410
        %431 = vmatprep.subr.mxu0 0.0
        %432 = vmatpush1.msra.mxu0 %v411
        %433 = vmatprep.subr.mxu0 0.0
        %434 = vmatpush1.msra.mxu0 %v412
        %435 = vmatprep.subr.mxu0 0.0
        %436 = vmatpush1.msra.mxu0 %v413
        %437 = vmatprep.subr.mxu0 0.0
        %438 = vmatpush1.msra.mxu0 %v414
        %439 = vmatprep.subr.mxu0 0.0
        %440 = vmatpush1.msra.mxu0 %v415
        %441 = vmatprep.subr.mxu0 0.0
        %442 = vmatpush1.msra.mxu0 %v416
        %443 = vmatprep.subr.mxu0 0.0
        %444 = vmatpush1.msra.mxu0 %v417
        %445 = vmatprep.subr.mxu0 0.0
        %446 = vmatpush1.msra.mxu0 %v418
        %447 = vmatprep.subr.mxu0 0.0
        %448 = vmatpush1.msra.mxu0 %v419
        %449 = vmatprep.subr.mxu0 0.0
        %450 = vmatpush1.msra.mxu0 %v420
        %451 = vmatprep.subr.mxu0 0.0
        %452 = vmatpush1.msra.mxu0 %v421
        %453 = vmatprep.subr.mxu0 0.0
        %454 = vmatpush1.msra.mxu0 %v422
        %455 = vmatprep.subr.mxu0 0.0
        %456 = vmatpush1.msra.mxu0 0.0
        %457 = vmatprep.subr.mxu0 0.0
        %458 = vmatpush1.msra.mxu0 0.0
        %459 = vmatprep.subr.mxu0 0.0
        %460 = vmatpush1.msra.mxu0 0.0
        %461 = vmatprep.subr.mxu0 0.0
        %462 = vmatpush1.msra.mxu0 0.0
        %463 = vmatprep.subr.mxu0 0.0
        %464 = vmatpush1.msra.mxu0 0.0
        %465 = vmatprep.subr.mxu0 0.0
        %466 = vmatpush1.msra.mxu0 0.0
        %467 = vmatprep.subr.mxu0 0.0
        %468 = vmatpush1.msra.mxu0 0.0
        %469 = vmatprep.subr.mxu0 0.0
        %470 = vmatpush1.msra.mxu0 0.0
        %471 = vmatprep.subr.mxu0 0.0
        %472 = vmatpush1.msra.mxu0 0.0
        %473 = vmatprep.subr.mxu0 0.0
        %474 = vmatpush1.msra.mxu0 0.0
        %475 = vmatprep.subr.mxu0 0.0
        %476 = vmatpush1.msra.mxu0 0.0
        %477 = vmatprep.subr.mxu0 0.0
        %478 = vmatpush1.msra.mxu0 0.0
        %479 = vmatprep.subr.mxu0 0.0
        %480 = vmatpush1.msra.mxu0 0.0
        %481 = vmatprep.subr.mxu0 0.0
        %482 = vmatpush1.msra.mxu0 0.0
        %483 = vmatprep.subr.mxu0 0.0
        %484 = vmatpush1.msra.mxu0 0.0
        %485 = vmatprep.subr.mxu0 0.0
        %486 = vmatpush1.msra.mxu0 0.0
        %487 = vmatprep.mubr.f32.mxu0 0.0
        %488 = vmatmul.mubr.f32.gmra.mrb[0].mxu0 %v403
        %v489 = vpop.f32.mrb[0].mxu0
        %v490 = vadd.f32 0.0, %v489
        %v491 = vpop.f32.mrb[0].mxu0
        %492 = vmatprep.mubr.f32.mxu0 0.0
        %493 = vmatmul.mubr.f32.gmra.mrb[0].mxu0 %v404
        %v494 = vpop.f32.mrb[0].mxu0
        %v495 = vadd.f32 0.0, %v494
        %v496 = vpop.f32.mrb[0].mxu0
        %497 = vdwg.mxu0
        %v498 = vadd.f32 %v405, %v490
        %v499 = vadd.f32 %v406, %v495
        %500 = vst [vmem:[#allocation2] sm:$0xff] %v498
        %501 = vst [vmem:[#allocation2 + $0x8] sm:$0xff] %v499
        %v502 = vld [vmem:[#allocation3] sm:$0xff]
        %v503 = vld [vmem:[#allocation3 + $0x8] sm:$0xff]
        %v504 = vld [vmem:[%s345] sm:$0xff]
        %v505 = vld [vmem:[%s345 + $0x8] sm:$0xff]
        %v506 = vld [vmem:[%s345 + $0x10] sm:$0xff]
        %v507 = vld [vmem:[%s345 + $0x18] sm:$0xff]
        %v508 = vld [vmem:[%s345 + $0x20] sm:$0xff]
        %v509 = vld [vmem:[%s345 + $0x28] sm:$0xff]
        %v510 = vld [vmem:[%s345 + $0x30] sm:$0xff]
        %v511 = vld [vmem:[%s345 + $0x38] sm:$0xff]
        %v512 = vld [vmem:[%s345 + $0x40] sm:$0xff]
        %v513 = vld [vmem:[%s345 + $0x48] sm:$0xff]
        %v514 = vld [vmem:[%s345 + $0x50] sm:$0xff]
        %v515 = vld [vmem:[%s345 + $0x58] sm:$0xff]
        %v516 = vld [vmem:[%s345 + $0x60] sm:$0xff]
        %v517 = vld [vmem:[%s345 + $0x68] sm:$0xff]
        %v518 = vld [vmem:[%s345 + $0x70] sm:$0xff]
        %v519 = vld [vmem:[%s345 + $0x78] sm:$0xff]
        %520 = vmatprep.subr.mxu0 0.0
        %521 = vmatpush1.msra.mxu0 %v504
        %522 = vmatprep.subr.mxu0 0.0
        %523 = vmatpush1.msra.mxu0 %v505
        %524 = vmatprep.subr.mxu0 0.0
        %525 = vmatpush1.msra.mxu0 %v506
        %526 = vmatprep.subr.mxu0 0.0
        %527 = vmatpush1.msra.mxu0 %v507
        %528 = vmatprep.subr.mxu0 0.0
        %529 = vmatpush1.msra.mxu0 %v508
        %530 = vmatprep.subr.mxu0 0.0
        %531 = vmatpush1.msra.mxu0 %v509
        %532 = vmatprep.subr.mxu0 0.0
        %533 = vmatpush1.msra.mxu0 %v510
        %534 = vmatprep.subr.mxu0 0.0
        %535 = vmatpush1.msra.mxu0 %v511
        %536 = vmatprep.subr.mxu0 0.0
        %537 = vmatpush1.msra.mxu0 %v512
        %538 = vmatprep.subr.mxu0 0.0
        %539 = vmatpush1.msra.mxu0 %v513
        %540 = vmatprep.subr.mxu0 0.0
        %541 = vmatpush1.msra.mxu0 %v514
        %542 = vmatprep.subr.mxu0 0.0
        %543 = vmatpush1.msra.mxu0 %v515
        %544 = vmatprep.subr.mxu0 0.0
        %545 = vmatpush1.msra.mxu0 %v516
        %546 = vmatprep.subr.mxu0 0.0
        %547 = vmatpush1.msra.mxu0 %v517
        %548 = vmatprep.subr.mxu0 0.0
        %549 = vmatpush1.msra.mxu0 %v518
        %550 = vmatprep.subr.mxu0 0.0
        %551 = vmatpush1.msra.mxu0 %v519
        %552 = vmatprep.subr.mxu0 0.0
        %553 = vmatpush1.msra.mxu0 0.0
        %554 = vmatprep.subr.mxu0 0.0
        %555 = vmatpush1.msra.mxu0 0.0
        %556 = vmatprep.subr.mxu0 0.0
        %557 = vmatpush1.msra.mxu0 0.0
        %558 = vmatprep.subr.mxu0 0.0
        %559 = vmatpush1.msra.mxu0 0.0
        %560 = vmatprep.subr.mxu0 0.0
        %561 = vmatpush1.msra.mxu0 0.0
        %562 = vmatprep.subr.mxu0 0.0
        %563 = vmatpush1.msra.mxu0 0.0
        %564 = vmatprep.subr.mxu0 0.0
        %565 = vmatpush1.msra.mxu0 0.0
        %566 = vmatprep.subr.mxu0 0.0
        %567 = vmatpush1.msra.mxu0 0.0
        %568 = vmatprep.subr.mxu0 0.0
        %569 = vmatpush1.msra.mxu0 0.0
        %570 = vmatprep.subr.mxu0 0.0
        %571 = vmatpush1.msra.mxu0 0.0
        %572 = vmatprep.subr.mxu0 0.0
        %573 = vmatpush1.msra.mxu0 0.0
        %574 = vmatprep.subr.mxu0 0.0
        %575 = vmatpush1.msra.mxu0 0.0
        %576 = vmatprep.subr.mxu0 0.0
        %577 = vmatpush1.msra.mxu0 0.0
        %578 = vmatprep.subr.mxu0 0.0
        %579 = vmatpush1.msra.mxu0 0.0
        %580 = vmatprep.subr.mxu0 0.0
        %581 = vmatpush1.msra.mxu0 0.0
        %582 = vmatprep.subr.mxu0 0.0
        %583 = vmatpush1.msra.mxu0 0.0
        %584 = vmatprep.mubr.f32.mxu0 0.0
        %585 = vmatmul.mubr.f32.gmra.mrb[0].mxu0 %v403
        %v586 = vpop.f32.mrb[0].mxu0
        %v587 = vadd.f32 0.0, %v586
        %v588 = vpop.f32.mrb[0].mxu0
        %589 = vmatprep.mubr.f32.mxu0 0.0
        %590 = vmatmul.mubr.f32.gmra.mrb[0].mxu0 %v404
        %v591 = vpop.f32.mrb[0].mxu0
        %v592 = vadd.f32 0.0, %v591
        %v593 = vpop.f32.mrb[0].mxu0
        %594 = vdwg.mxu0
        %v595 = vadd.f32 %v502, %v587
        %v596 = vadd.f32 %v503, %v592
        %597 = vst [vmem:[#allocation3] sm:$0xff] %v595
        %598 = vst [vmem:[#allocation3 + $0x8] sm:$0xff] %v596
        // Predicated region
        $region61: #{_swiglu_impl.1} parent=43 // pred_check
          %p599 = pneg %p395
        $region62: #{_swiglu_impl.1} parent=43 // pred_check_branch
          %601 = sbr.rel (%p599) target = $region64
        $region63: #{_swiglu_impl.1} parent=43 // pred_region
          %v602 = vld [vmem:[#allocation2] sm:$0xff]
          %v603 = vld [vmem:[#allocation2 + $0x8] sm:$0xff]
          %v604 = vld [vmem:[%s390] sm:$0x1]
          %v606 = vlaneseq
          %v607 = vshrl.u32 %v606, 7
          %v608 = vsub.s32 0, %v607
          %v609 = vrot.slane %v604, %v608
          %v611 = vadd.f32 %v602, %v609
          %v612 = vadd.f32 %v603, %v609
          %v613 = vld [vmem:[#allocation3] sm:$0xff]
          %v614 = vld [vmem:[#allocation3 + $0x8] sm:$0xff]
          %v615 = vld [vmem:[%s393] sm:$0x1]
          %v617 = vlaneseq
          %v618 = vshrl.u32 %v617, 7
          %v619 = vsub.s32 0, %v618
          %v620 = vrot.slane %v615, %v619
          %v622 = vadd.f32 %v613, %v620
          %v623 = vadd.f32 %v614, %v620
          %s624 = sld [smem:[#allocation4]]
          %v625 = vstv %s624
          %v626 = vmul.f32 %v625, %v622
          %v627 = vmul.f32 %v625, %v623
          %v628 = vxor.u32 %v626, 2147483648
          %v629 = vxor.u32 %v627, 2147483648
          %v630 = vmul.f32 %v628, 1.442695
          %v631 = vpow.pop %v630
          %v632 = vmul.f32 %v629, 1.442695
          %v633 = vpow.pop %v632
          %v634 = vadd.f32 %v631, 1.0
          %v635 = vadd.f32 %v633, 1.0
          %v636 = vrcp.pop %v634
          %v637 = vmul.f32 1.0, %v636
          %v638 = vrcp.pop %v635
          %v639 = vmul.f32 1.0, %v638
          %v640 = vmul.f32 %v622, %v637
          %v641 = vmul.f32 %v623, %v639
          %v642 = vmul.f32 %v611, %v640
          %v643 = vmul.f32 %v612, %v641
          %644 = vst [vmem:[%s384] sm:$0xff] %v642
          %645 = vst [vmem:[%s384 + $0x8] sm:$0xff] %v643
        $region64: #{_swiglu_impl.1} parent=43 // pred_fallthru
          _
        %s646 = sand.u32 %s211, 1
        %s647 = scalar_lea.sflag [#allocation7], %s646
        %s648 = sand.u32 %s211, 1
        %s649 = smul.addr %s648, 16
        %s650 = scalar_lea.vmem [#allocation11], %s649
        // Predicated region
        $region65: #{_swiglu_impl.1} parent=43 // pred_check
          %p651 = pneg %p221
        $region66: #{_swiglu_impl.1} parent=43 // pred_check_branch
          %653 = sbr.rel (%p651) target = $region68
        $region67: #{_swiglu_impl.1} parent=43 // pred_region
          %s654 = smul.u32 2, %s30
          %s656 = ssub.s32 256, 256
          %657 = vsyncadd %s647, %s656
          %s658 = smul.addr %s654, 2
          %s659 = sadd.s32 %s31, %s658
          %s660 = smul.addr %s659, 128
          %s661 = scalar_lea.hbm %s6, %s660
          %s662 = sshll.u32 %s650, 4
          %s663 = int_to_ptr.vmem [resolvable:$true] %s662
          %668 = dma.vmem_to_hbm [thread:$0]  %s663, 256, %s661, %s647, 128, 256, 8
        $region68: #{_swiglu_impl.1} parent=43 // pred_fallthru
          _
      $region44: #{_swiglu_impl.1} parent=5 // pred_fallthru
        _
      %p669 = scmp.le.s32.totalorder 2, %s20
      // Predicated region
      $region69: #{_swiglu_impl.1} parent=5 // pred_check
        %p670 = pneg %p669
      $region70: #{_swiglu_impl.1} parent=5 // pred_check_branch
        %672 = sbr.rel (%p670) target = $region72
      $region71: #{_swiglu_impl.1} parent=5 // pred_region
        %s673 = ssub.s32 %s20, 2
        // Predicated region
        $region73: #{_swiglu_impl.1} parent=71 // pred_check
          %p674 = pneg %p227
        $region74: #{_swiglu_impl.1} parent=71 // pred_check_branch
          %676 = sbr.rel (%p674) target = $region76
        $region75: #{_swiglu_impl.1} parent=71 // pred_region
          %s677 = sand.u32 %s212, 1
          %s678 = scalar_lea.sflag [#allocation7], %s677
          %s679 = sand.u32 %s212, 1
          %s680 = smul.addr %s679, 16
          %s681 = scalar_lea.vmem [#allocation11], %s680
          %682 = dma.done %s678, 256
        $region76: #{_swiglu_impl.1} parent=71 // pred_fallthru
          _
      $region72: #{_swiglu_impl.1} parent=5 // pred_fallthru
        _
    $region6: #{_swiglu_impl.1} parent=1 // loop_footer
      %s24 = sadd.s32 1, %s20
    $region7: #{_swiglu_impl.1} parent=1 // loop_footer_branch
      %19 = sbr.rel target = $region3
    $region8: #{_swiglu_impl.1} parent=1 // loop_exit
      _
    %683 = vsyncpa [#allocation6], 1
    %s684 = scalar_lea.sflag [#allocation6], 1
    %685 = vsyncpa %s684, 1
    %686 = vsyncpa [#allocation9], 1
    %s687 = scalar_lea.sflag [#allocation9], 1
    %688 = vsyncpa %s687, 1
    %689 = vsyncpa [#allocation7], 1
    %s690 = scalar_lea.sflag [#allocation7], 1
    %691 = vsyncpa %s690, 1

</llo_original>
